<compile_context>
chip_gen: v6e
topology: v6e:2x2x1
jax: 0.10.0
libtpu: 0.0.40
codegen_flags: <defaults>
</compile_context>

<pallas_src>
import jax
import jax.numpy as jnp
from jax.experimental import pallas as pl
from jax.experimental.pallas import tpu as pltpu


def geotrp_kernel(w_ref, x_ref, o_ref):
    # w_ref: (Cout*(Cin+1),) SMEM, per out channel: [w_0 .. w_{Cin-1}, bias]
    #        (normalization already folded in).
    # x_ref: (1, Cin,  TM, 128)  pixel-dense slabs.
    # o_ref: (1, Cout, TM, 128)  normalized backward-map tile.
    cin = x_ref.shape[1]
    cout = o_ref.shape[1]
    xs = [x_ref[0, k].astype(jnp.float32) for k in range(cin)]  # (TM,128) slabs
    for c in range(cout):                    # static unroll: Cout == 2
        base = c * (cin + 1)
        # bias folded into the first FMA
        acc = w_ref[base] * xs[0] + w_ref[base + cin]
        for k in range(1, cin):              # static unroll: Cin == 3
            acc = acc + w_ref[base + k] * xs[k]
        o_ref[0, c] = acc.astype(o_ref.dtype)


def _cdiv(a, b):
    return (a + b - 1) // b


def _round_up(n, m):
    return ((n + m - 1) // m) * m


def _init_params(cin, cout=2):
    k_w, k_b = jax.random.split(jax.random.PRNGKey(0))
    w = jax.random.normal(k_w, (cout, cin), jnp.float32) * 0.1
    b = jax.random.normal(k_b, (cout,), jnp.float32) * 0.1
    return w, b


def _choose_tm_rows(rows, batch, tm_max=1024, min_steps=4):
    """Row-tile size: big enough to amortize per-step overhead, multiple of 8
    (or full extent), and leaving >= min_steps grid steps for v7x megacore."""
    tm = min(tm_max, rows)
    if tm != rows:
        tm = max(8, (tm // 8) * 8)
    while tm > 8 and batch * _cdiv(rows, tm) < min_steps:
        tm = max(8, ((tm // 2) // 8) * 8)
    return tm


def geotrp_forward(x, w, b, tm_rows_max=1024):
    B, C, H, W = x.shape
    cout = w.shape[0]
    P = H * W

    # Fold GeoTrP normalization into the conv params (compile-time consts):
    #   (2*((w@x + b)/286.8) - 1)*0.99 == (s*w)@x + (s*b - 0.99),  s = 2*0.99/286.8
    scale = jnp.float32(2.0 * 0.99 / 286.8)
    w_f = w.astype(jnp.float32) * scale                      # (Cout, Cin)
    b_f = scale * b.astype(jnp.float32) - jnp.float32(0.99)  # (Cout,)
    # Flat 1D SMEM layout (avoids 2D SMEM (8,128)-word padding):
    w_flat = jnp.concatenate([w_f, b_f[:, None]], axis=1).reshape(-1)

    # 2D pixel layout: both sublane and lane axes pixel-dense.
    P128 = _round_up(P, 128)
    xp = x.reshape(B, C, P)                  # pure reshape, pixels contiguous
    if P128 != P:
        # minimal 128-lane alignment pad only (never pad to the tile size)
        xp = jnp.pad(xp, ((0, 0), (0, 0), (0, P128 - P)))
    R = P128 // 128
    xp = xp.reshape(B, C, R, 128)

    tm = _choose_tm_rows(R, B, tm_rows_max)
    grid = (B, _cdiv(R, tm))                 # ragged last row-tile masked by Pallas

    out = pl.pallas_call(
        geotrp_kernel,
        out_shape=jax.ShapeDtypeStruct((B, cout, R, 128), jnp.float32),
        grid_spec=pltpu.PrefetchScalarGridSpec(
            num_scalar_prefetch=0,
            grid=grid,
            in_specs=[
                pl.BlockSpec(memory_space=pltpu.MemorySpace.SMEM),  # folded w/b
                pl.BlockSpec((1, C, tm, 128), lambda bi, j: (bi, 0, j, 0)),
            ],
            out_specs=pl.BlockSpec((1, cout, tm, 128), lambda bi, j: (bi, 0, j, 0)),
        ),
        compiler_params=pltpu.CompilerParams(
            dimension_semantics=("parallel", "parallel"),
        ),
    )(w_flat, xp)

    out = out.reshape(B, cout, P128)
    if P128 != P:
        out = out[:, :, :P]
    return out.reshape(B, cout, H, W)


def _reference(x, w, b):
    bm = jnp.einsum("oc,bchw->bohw", w, x) + b[None, :, None, None]
    return (2.0 * (bm / 286.8) - 1.0) * 0.99


def _check(x, w, b, tm_rows_max=1024):
    out = geotrp_forward(x, w, b, tm_rows_max=tm_rows_max)
    jax.block_until_ready(out)
    ref = _reference(x, w, b)
    assert out.shape == ref.shape
    assert out.dtype == jnp.float32
    assert bool(jnp.all(jnp.isfinite(out)))
    assert bool(jnp.allclose(out, ref, rtol=1e-5, atol=1e-6)), (
        float(jnp.max(jnp.abs(out - ref))))
    return out


if __name__ == "__main__":
    key = jax.random.PRNGKey(0)
    B, C = 2, 3
    w, b = _init_params(C, cout=2)

    # Main small case: H*W multiple of 128, no padding, full-extent row tile.
    x = jax.random.normal(key, (B, C, 16, 16), jnp.float32)
    _check(x, w, b)

    # Second small case: H*W not a multiple of 128 (minimal alignment pad) and
    # a tiny row-tile cap to exercise the ragged last row-tile path.
    x2 = jax.random.normal(jax.random.PRNGKey(0), (B, C, 36, 36), jnp.float32)
    _check(x2, w, b, tm_rows_max=8)

    print("KERNEL_OK")
</pallas_src>

<mosaic_0001>
module attributes {stable_mosaic.version = 11 : i64} {
  func.func @geotrp_kernel(%arg0: i32, %arg1: i32, %arg2: memref<8xf32, #tpu.memory_space<smem>>, %arg3: memref<1x3x2x128xf32, #tpu.memory_space<vmem>>, %arg4: memref<1x2x2x128xf32, #tpu.memory_space<vmem>>) attributes {dimension_semantics = [#tpu.dimension_semantics<parallel>, #tpu.dimension_semantics<parallel>], iteration_bounds = array<i64: 2, 1>, scalar_prefetch = 0 : i64, scratch_operands = 0 : i64, tpu.core_type = #tpu.core_type<tc>, window_params = [{transform_indices = @transform_0, window_bounds = array<i64: 8>}, {transform_indices = @transform_1, window_bounds = array<i64: 1, 3, 2, 128>}, {transform_indices = @transform_2, window_bounds = array<i64: 1, 2, 2, 128>}]} {
    %c0 = arith.constant 0 : index
    %c0_0 = arith.constant 0 : index
    %c0_1 = arith.constant 0 : index
    %c0_2 = arith.constant 0 : index
    %0 = vector.load %arg3[%c0, %c0_0, %c0_1, %c0_2] : memref<1x3x2x128xf32, #tpu.memory_space<vmem>>, vector<1x1x2x128xf32>
    %1 = vector.shape_cast %0 : vector<1x1x2x128xf32> to vector<2x128xf32>
    %c0_3 = arith.constant 0 : index
    %c1 = arith.constant 1 : index
    %c0_4 = arith.constant 0 : index
    %c0_5 = arith.constant 0 : index
    %2 = vector.load %arg3[%c0_3, %c1, %c0_4, %c0_5] : memref<1x3x2x128xf32, #tpu.memory_space<vmem>>, vector<1x1x2x128xf32>
    %3 = vector.shape_cast %2 : vector<1x1x2x128xf32> to vector<2x128xf32>
    %c0_6 = arith.constant 0 : index
    %c2 = arith.constant 2 : index
    %c0_7 = arith.constant 0 : index
    %c0_8 = arith.constant 0 : index
    %4 = vector.load %arg3[%c0_6, %c2, %c0_7, %c0_8] : memref<1x3x2x128xf32, #tpu.memory_space<vmem>>, vector<1x1x2x128xf32>
    %5 = vector.shape_cast %4 : vector<1x1x2x128xf32> to vector<2x128xf32>
    %c0_9 = arith.constant 0 : index
    %6 = memref.load %arg2[%c0_9] : memref<8xf32, #tpu.memory_space<smem>>
    %7 = vector.broadcast %6 : f32 to vector<2x128xf32>
    %8 = arith.mulf %7, %1 : vector<2x128xf32>
    %c3 = arith.constant 3 : index
    %9 = memref.load %arg2[%c3] : memref<8xf32, #tpu.memory_space<smem>>
    %10 = vector.broadcast %9 : f32 to vector<2x128xf32>
    %11 = arith.addf %8, %10 : vector<2x128xf32>
    %c1_10 = arith.constant 1 : index
    %12 = memref.load %arg2[%c1_10] : memref<8xf32, #tpu.memory_space<smem>>
    %13 = vector.broadcast %12 : f32 to vector<2x128xf32>
    %14 = arith.mulf %13, %3 : vector<2x128xf32>
    %15 = arith.addf %11, %14 : vector<2x128xf32>
    %c2_11 = arith.constant 2 : index
    %16 = memref.load %arg2[%c2_11] : memref<8xf32, #tpu.memory_space<smem>>
    %17 = vector.broadcast %16 : f32 to vector<2x128xf32>
    %18 = arith.mulf %17, %5 : vector<2x128xf32>
    %19 = arith.addf %15, %18 : vector<2x128xf32>
    %c0_12 = arith.constant 0 : index
    %c0_13 = arith.constant 0 : index
    %c0_14 = arith.constant 0 : index
    %c0_15 = arith.constant 0 : index
    %20 = vector.load %arg4[%c0_12, %c0_13, %c0_14, %c0_15] : memref<1x2x2x128xf32, #tpu.memory_space<vmem>>, vector<1x1x2x128xf32>
    %21 = vector.shape_cast %20 : vector<1x1x2x128xf32> to vector<2x128xf32>
    %22 = vector.shape_cast %19 : vector<2x128xf32> to vector<1x1x2x128xf32>
    tpu.vector_store %arg4[%c0_12, %c0_13, %c0_14, %c0_15], %22 {strides = array<i32>} : memref<1x2x2x128xf32, #tpu.memory_space<vmem>>, vector<1x1x2x128xf32>,
    %c4 = arith.constant 4 : index
    %23 = memref.load %arg2[%c4] : memref<8xf32, #tpu.memory_space<smem>>
    %24 = vector.broadcast %23 : f32 to vector<2x128xf32>
    %25 = arith.mulf %24, %1 : vector<2x128xf32>
    %c7 = arith.constant 7 : index
    %26 = memref.load %arg2[%c7] : memref<8xf32, #tpu.memory_space<smem>>
    %27 = vector.broadcast %26 : f32 to vector<2x128xf32>
    %28 = arith.addf %25, %27 : vector<2x128xf32>
    %c5 = arith.constant 5 : index
    %29 = memref.load %arg2[%c5] : memref<8xf32, #tpu.memory_space<smem>>
    %30 = vector.broadcast %29 : f32 to vector<2x128xf32>
    %31 = arith.mulf %30, %3 : vector<2x128xf32>
    %32 = arith.addf %28, %31 : vector<2x128xf32>
    %c6 = arith.constant 6 : index
    %33 = memref.load %arg2[%c6] : memref<8xf32, #tpu.memory_space<smem>>
    %34 = vector.broadcast %33 : f32 to vector<2x128xf32>
    %35 = arith.mulf %34, %5 : vector<2x128xf32>
    %36 = arith.addf %32, %35 : vector<2x128xf32>
    %c0_16 = arith.constant 0 : index
    %c1_17 = arith.constant 1 : index
    %c0_18 = arith.constant 0 : index
    %c0_19 = arith.constant 0 : index
    %37 = vector.load %arg4[%c0_16, %c1_17, %c0_18, %c0_19] : memref<1x2x2x128xf32, #tpu.memory_space<vmem>>, vector<1x1x2x128xf32>
    %38 = vector.shape_cast %37 : vector<1x1x2x128xf32> to vector<2x128xf32>
    %39 = vector.shape_cast %36 : vector<2x128xf32> to vector<1x1x2x128xf32>
    tpu.vector_store %arg4[%c0_16, %c1_17, %c0_18, %c0_19], %39 {strides = array<i32>} : memref<1x2x2x128xf32, #tpu.memory_space<vmem>>, vector<1x1x2x128xf32>,
    return
  }
  func.func @transform_0(%arg0: i32, %arg1: i32) -> i32 {
    %c0_i32 = arith.constant 0 : i32
    %c0_i32_0 = arith.constant 0 : i32
    return %c0_i32 : i32
  }
  func.func @transform_1(%arg0: i32, %arg1: i32) -> (i32, i32, i32, i32) {
    %c0_i32 = arith.constant 0 : i32
    %c0_i32_0 = arith.constant 0 : i32
    %c0_i32_1 = arith.constant 0 : i32
    return %arg0, %c0_i32, %arg1, %c0_i32_0 : i32, i32, i32, i32
  }
  func.func @transform_2(%arg0: i32, %arg1: i32) -> (i32, i32, i32, i32) {
    %c0_i32 = arith.constant 0 : i32
    %c0_i32_0 = arith.constant 0 : i32
    %c0_i32_1 = arith.constant 0 : i32
    return %arg0, %c0_i32, %arg1, %c0_i32_0 : i32, i32, i32, i32
  }
}

</mosaic_0001>

<llo_original>
// kernel: tpu_custom_call.1
$region0: #{tpu_custom_call.1}
  #allocation0 [shape = 'u32[]', space=smem, size = 0x4, offset = 0x4, fixed_abs, tag = 'smem constant byte address 0x4 - core index']
  #allocation1 [shape = 'u32[144,128]{1,0:T(1,128)}', space=vmem, size = 0x12000, scoped, tag = 'internal scratch']
  %s0 = inlined_call_operand.hbm [shape: f32[8], index: 0, kind: input, shape index: {}]
  %s1 = inlined_call_operand.hbm [shape: f32[2,3,2,128], index: 1, kind: input, shape index: {}]
  %s2 = inlined_call_operand.hbm [shape: f32[2,2,2,128], index: 2, kind: output, shape index: {}]
  %s3 = sld [smem:[#allocation0]]
  $region49: #{tpu_custom_call.1} parent=0
    _
  %s5 = ssub.s32 1, %s3
  %s6 = scalar_select 0, %s5, %s3
  $region1: #{tpu_custom_call.1} parent=0
    #allocation2 [shape = 'u8[512]{0}', space=smem, size = 0x200, scoped, tag = 'input window, operand 0, single buffered']
    #allocation3 [shape = 's32[2]{0}', space=sflag, size = 0x8, scoped, tag = 'scoped memory for tpu_custom_call.1']
    #allocation4 [shape = 's32[2]{0}', space=sflag, size = 0x8, scoped, tag = 'scoped memory for tpu_custom_call.1']
    #allocation5 [shape = 's32[2]{0}', space=sflag, size = 0x8, scoped, tag = 'scoped memory for tpu_custom_call.1']
    #allocation6 [shape = 'u8[6144]{0}', space=vmem, size = 0x1800, scoped, tag = 'input window, operand 1']
    #allocation7 [shape = 'u8[4096]{0}', space=vmem, size = 0x1000, scoped, tag = 'output window, operand 0']
    %7 = vsyncpa [#allocation5], 0
    %8 = vsyncpa [#allocation3], 0
    %s9 = scalar_lea.sflag [#allocation3], 1
    %10 = vsyncpa %s9, 0
    %11 = vsyncpa [#allocation4], 0
    %s12 = scalar_lea.sflag [#allocation4], 1
    %13 = vsyncpa %s12, 0
    loop: start=0, step=1, limit=4
    $region2: #{tpu_custom_call.1} parent=1 // loop_pre_header
      _
    $region3: #{tpu_custom_call.1} parent=1 // loop_header
      %s15 = sphi 0, %s19
      %p16 = scmp.ge.s32.totalorder %s15, 4
      %s22 = sphi 0, %s34
      %s23 = sphi 0, %s30
      %s24 = sphi 0, %s22
      %s25 = sphi 0, %s23
      %s26 = sphi 0, %s24
      %s27 = sphi 0, %s25
      %s35 = sphi 0, %s35
      %s37 = sphi 0, %s35
      %s38 = sphi 0, %s37
      %s52 = sphi 0, %s38
      %s60 = sphi 0, %s62
      %s63 = sphi 0, %s60
      %s64 = sphi 0, %s63
      %s80 = sphi 0, %s64
      %s88 = sphi 0, %s90
      %s91 = sphi 0, %s88
      %s92 = sphi 0, %s91
      %s108 = sphi 0, %s92
    $region4: #{tpu_custom_call.1} parent=1 // loop_header_branch
      %18 = sbr.rel (%p16) target = $region8
    $region5: #{tpu_custom_call.1} parent=1 // loop_body
      %s20 = ssub.s32 %s15, 1
      %s21 = ssub.s32 %s15, 2
      %s28 = sadd.s32 1, %s23
      %p29 = scmp.ge.s32.totalorder %s28, 1
      %s30 = scalar_select %p29, 0, %s28
      %s31 = sadd.s32 1, %s22
      %s32 = scalar_select %p29, %s31, %s22
      %p33 = scmp.ge.s32.totalorder %s32, 2
      %s34 = scalar_select %p33, 0, %s32
      %s36 = sadd.s32 %s35, 1
      %p39 = scmp.eq.s32.totalorder %s15, 1
      %p40 = scmp.ne.s32.totalorder %s35, %s37
      %p41 = scmp.eq.s32.totalorder %s15, 0
      %p42 = por %p40, %p41
      %p43 = scmp.ne.s32.totalorder %s35, %s37
      %p44 = scmp.eq.s32.totalorder %s20, 1
      %p45 = por %p43, %p44
      %p46 = scmp.ne.s32.totalorder %s37, %s38
      %p47 = scmp.eq.s32.totalorder %s20, 0
      %p48 = por %p46, %p47
      %p49 = scmp.ne.s32.totalorder %s37, %s38
      %p50 = scmp.eq.s32.totalorder %s21, 1
      %p51 = por %p49, %p50
      %p53 = scmp.ne.s32.totalorder %s38, %s52
      %p54 = scmp.eq.s32.totalorder %s21, 0
      %p55 = por %p53, %p54
      %s56 = ssub.s32 %s22, %s34
      %s57 = ssub.s32 %s23, %s30
      %s58 = sor.u32 %s56, %s57
      %p59 = scmp.eq.s32.totalorder %s58, 0
      %s61 = sadd.s32 %s60, 1
      %s62 = scalar_select %p59, %s60, %s61
      %p65 = pneg %p59
      %p66 = scmp.eq.s32.totalorder %s15, 1
      %p67 = por %p65, %p66
      %p68 = scmp.ne.s32.totalorder %s60, %s63
      %p69 = scmp.eq.s32.totalorder %s15, 0
      %p70 = por %p68, %p69
      %p71 = scmp.ne.s32.totalorder %s60, %s63
      %p72 = scmp.eq.s32.totalorder %s20, 1
      %p73 = por %p71, %p72
      %p74 = scmp.ne.s32.totalorder %s63, %s64
      %p75 = scmp.eq.s32.totalorder %s20, 0
      %p76 = por %p74, %p75
      %p77 = scmp.ne.s32.totalorder %s63, %s64
      %p78 = scmp.eq.s32.totalorder %s21, 1
      %p79 = por %p77, %p78
      %p81 = scmp.ne.s32.totalorder %s64, %s80
      %p82 = scmp.eq.s32.totalorder %s21, 0
      %p83 = por %p81, %p82
      %s84 = ssub.s32 %s22, %s34
      %s85 = ssub.s32 %s23, %s30
      %s86 = sor.u32 %s84, %s85
      %p87 = scmp.eq.s32.totalorder %s86, 0
      %s89 = sadd.s32 %s88, 1
      %s90 = scalar_select %p87, %s88, %s89
      %p93 = pneg %p87
      %p94 = scmp.eq.s32.totalorder %s15, 1
      %p95 = por %p93, %p94
      %p96 = scmp.ne.s32.totalorder %s88, %s91
      %p97 = scmp.eq.s32.totalorder %s15, 0
      %p98 = por %p96, %p97
      %p99 = scmp.ne.s32.totalorder %s88, %s91
      %p100 = scmp.eq.s32.totalorder %s20, 1
      %p101 = por %p99, %p100
      %p102 = scmp.ne.s32.totalorder %s91, %s92
      %p103 = scmp.eq.s32.totalorder %s20, 0
      %p104 = por %p102, %p103
      %p105 = scmp.ne.s32.totalorder %s91, %s92
      %p106 = scmp.eq.s32.totalorder %s21, 1
      %p107 = por %p105, %p106
      %p109 = scmp.ne.s32.totalorder %s92, %s108
      %p110 = scmp.eq.s32.totalorder %s21, 0
      %p111 = por %p109, %p110
      %p112 = scmp.le.s32.totalorder 1, %s15
      %p113 = scmp.lt.s32.totalorder %s15, 3
      %p114 = pnand %p112, %p113
      %p115 = pneg %p114
      // Predicated region
      $region9: #{tpu_custom_call.1} parent=5 // pred_check
        _
      $region10: #{tpu_custom_call.1} parent=5 // pred_check_branch
        %117 = sbr.rel (%p114) target = $region12
      $region11: #{tpu_custom_call.1} parent=5 // pred_region
        %s118 = ssub.s32 %s15, 1
        // Predicated region
        $region13: #{tpu_custom_call.1} parent=11 // pred_check
          %p119 = pneg %p48
        $region14: #{tpu_custom_call.1} parent=11 // pred_check_branch
          %121 = sbr.rel (%p119) target = $region16
        $region15: #{tpu_custom_call.1} parent=11 // pred_region
          %s123 = ssub.s32 16, 16
          %124 = vsyncadd [#allocation5], %s123
          %127 = dma.hbm_to_smem %s0, 16, [#allocation2], [#allocation5]
        $region16: #{tpu_custom_call.1} parent=11 // pred_fallthru
          _
      $region12: #{tpu_custom_call.1} parent=5 // pred_fallthru
        _
      %p128 = scmp.lt.s32.totalorder %s15, 2
      // Predicated region
      $region17: #{tpu_custom_call.1} parent=5 // pred_check
        %p129 = pneg %p128
      $region18: #{tpu_custom_call.1} parent=5 // pred_check_branch
        %131 = sbr.rel (%p129) target = $region20
      $region19: #{tpu_custom_call.1} parent=5 // pred_region
        // Predicated region
        $region21: #{tpu_custom_call.1} parent=19 // pred_check
          %p132 = pneg %p70
        $region22: #{tpu_custom_call.1} parent=19 // pred_check_branch
          %134 = sbr.rel (%p132) target = $region24
        $region23: #{tpu_custom_call.1} parent=19 // pred_region
          %s135 = sand.u32 %s60, 1
          %s136 = scalar_lea.sflag [#allocation3], %s135
          %s137 = sand.u32 %s60, 1
          %s138 = smul.addr %s137, 6
          %s139 = scalar_lea.vmem [#allocation6], %s138
          %s141 = ssub.s32 96, 96
          %142 = vsyncadd %s136, %s141
          %s143 = smul.addr %s22, 3
          %s144 = sadd.s32 %s23, %s143
          %s145 = smul.addr %s144, 32
          %s146 = scalar_lea.hbm %s1, %s145
          %s147 = sshll.u32 %s139, 4
          %s148 = int_to_ptr.vmem [resolvable:$true] %s147
          %153 = dma.hbm_to_vmem [thread:$0]  %s146, 96, %s148, %s136, 32, 32, 2
        $region24: #{tpu_custom_call.1} parent=19 // pred_fallthru
          _
      $region20: #{tpu_custom_call.1} parent=5 // pred_fallthru
        _
      %p154 = scmp.le.s32.totalorder 1, %s15
      %p155 = scmp.lt.s32.totalorder %s15, 3
      %p156 = pnand %p154, %p155
      %p157 = pneg %p156
      // Predicated region
      $region25: #{tpu_custom_call.1} parent=5 // pred_check
        _
      $region26: #{tpu_custom_call.1} parent=5 // pred_check_branch
        %159 = sbr.rel (%p156) target = $region28
      $region27: #{tpu_custom_call.1} parent=5 // pred_region
        %s160 = ssub.s32 %s15, 1
        // Predicated region
        $region29: #{tpu_custom_call.1} parent=27 // pred_check
          %p161 = pneg %p48
        $region30: #{tpu_custom_call.1} parent=27 // pred_check_branch
          %163 = sbr.rel (%p161) target = $region32
        $region31: #{tpu_custom_call.1} parent=27 // pred_region
          %164 = dma.done [#allocation5], 16
        $region32: #{tpu_custom_call.1} parent=27 // pred_fallthru
          _
        %s165 = sand.u32 %s63, 1
        %s166 = scalar_lea.sflag [#allocation3], %s165
        %s167 = sand.u32 %s63, 1
        %s168 = smul.addr %s167, 6
        %s169 = scalar_lea.vmem [#allocation6], %s168
        // Predicated region
        $region33: #{tpu_custom_call.1} parent=27 // pred_check
          %p170 = pneg %p76
        $region34: #{tpu_custom_call.1} parent=27 // pred_check_branch
          %172 = sbr.rel (%p170) target = $region36
        $region35: #{tpu_custom_call.1} parent=27 // pred_region
          %173 = dma.done %s166, 96
        $region36: #{tpu_custom_call.1} parent=27 // pred_fallthru
          _
        %174 = sfence
        %p175 = pneg %p48
        %p176 = pneg %p45
        %s177 = sand.u32 %s63, 1
        %s178 = scalar_lea.sflag [#allocation3], %s177
        %s179 = sand.u32 %s63, 1
        %s180 = smul.addr %s179, 6
        %s181 = scalar_lea.vmem [#allocation6], %s180
        %p182 = pneg %p76
        %p183 = pneg %p73
        %p184 = pneg %p104
        %p185 = pneg %p101
        %s186 = sand.u32 %s91, 1
        %s187 = scalar_lea.sflag [#allocation4], %s186
        %s188 = sand.u32 %s91, 1
        %s189 = smul.addr %s188, 4
        %s190 = scalar_lea.vmem [#allocation7], %s189
        %v191 = vld [vmem:[%s169] sm:$0x3]
        %s192 = scalar_lea.vmem %s169, 2 [#allocation6]
        %v193 = vld [vmem:[%s192] sm:$0x3]
        %s194 = scalar_lea.vmem %s169, 4 [#allocation6]
        %v195 = vld [vmem:[%s194] sm:$0x3]
        %s196 = sld [smem:[#allocation2]]
        %v197 = vstv %s196
        %v198 = vmul.f32 %v197, %v191
        %s199 = sld [smem:[#allocation2 + $0x3]]
        %v200 = vstv %s199
        %v201 = vadd.f32 %v198, %v200
        %s202 = sld [smem:[#allocation2 + $0x1]]
        %v203 = vstv %s202
        %v204 = vmul.f32 %v203, %v193
        %v205 = vadd.f32 %v201, %v204
        %s206 = sld [smem:[#allocation2 + $0x2]]
        %v207 = vstv %s206
        %v208 = vmul.f32 %v207, %v195
        %v209 = vadd.f32 %v205, %v208
        %210 = vst [vmem:[%s190] sm:$0x3] %v209
        %s211 = sld [smem:[#allocation2 + $0x4]]
        %v212 = vstv %s211
        %v213 = vmul.f32 %v212, %v191
        %s214 = sld [smem:[#allocation2 + $0x7]]
        %v215 = vstv %s214
        %v216 = vadd.f32 %v213, %v215
        %s217 = sld [smem:[#allocation2 + $0x5]]
        %v218 = vstv %s217
        %v219 = vmul.f32 %v218, %v193
        %v220 = vadd.f32 %v216, %v219
        %s221 = sld [smem:[#allocation2 + $0x6]]
        %v222 = vstv %s221
        %v223 = vmul.f32 %v222, %v195
        %v224 = vadd.f32 %v220, %v223
        %s225 = scalar_lea.vmem %s190, 2 [#allocation7]
        %226 = vst [vmem:[%s225] sm:$0x3] %v224
        %s227 = sand.u32 %s91, 1
        %s228 = scalar_lea.sflag [#allocation4], %s227
        %s229 = sand.u32 %s91, 1
        %s230 = smul.addr %s229, 4
        %s231 = scalar_lea.vmem [#allocation7], %s230
        // Predicated region
        $region37: #{tpu_custom_call.1} parent=27 // pred_check
          %p232 = pneg %p101
        $region38: #{tpu_custom_call.1} parent=27 // pred_check_branch
          %234 = sbr.rel (%p232) target = $region40
        $region39: #{tpu_custom_call.1} parent=27 // pred_region
          %s236 = ssub.s32 64, 64
          %237 = vsyncadd %s228, %s236
          %s238 = smul.addr %s24, 2
          %s239 = sadd.s32 %s25, %s238
          %s240 = smul.addr %s239, 32
          %s241 = scalar_lea.hbm %s2, %s240
          %s242 = sshll.u32 %s231, 4
          %s243 = int_to_ptr.vmem [resolvable:$true] %s242
          %248 = dma.vmem_to_hbm [thread:$0]  %s243, 64, %s241, %s228, 32, 32, 2
        $region40: #{tpu_custom_call.1} parent=27 // pred_fallthru
          _
      $region28: #{tpu_custom_call.1} parent=5 // pred_fallthru
        _
      %p249 = scmp.le.s32.totalorder 2, %s15
      // Predicated region
      $region41: #{tpu_custom_call.1} parent=5 // pred_check
        %p250 = pneg %p249
      $region42: #{tpu_custom_call.1} parent=5 // pred_check_branch
        %252 = sbr.rel (%p250) target = $region44
      $region43: #{tpu_custom_call.1} parent=5 // pred_region
        %s253 = ssub.s32 %s15, 2
        // Predicated region
        $region45: #{tpu_custom_call.1} parent=43 // pred_check
          %p254 = pneg %p107
        $region46: #{tpu_custom_call.1} parent=43 // pred_check_branch
          %256 = sbr.rel (%p254) target = $region48
        $region47: #{tpu_custom_call.1} parent=43 // pred_region
          %s257 = sand.u32 %s92, 1
          %s258 = scalar_lea.sflag [#allocation4], %s257
          %s259 = sand.u32 %s92, 1
          %s260 = smul.addr %s259, 4
          %s261 = scalar_lea.vmem [#allocation7], %s260
          %262 = dma.done %s258, 64
        $region48: #{tpu_custom_call.1} parent=43 // pred_fallthru
          _
      $region44: #{tpu_custom_call.1} parent=5 // pred_fallthru
        _
    $region6: #{tpu_custom_call.1} parent=1 // loop_footer
      %s19 = sadd.s32 1, %s15
    $region7: #{tpu_custom_call.1} parent=1 // loop_footer_branch
      %14 = sbr.rel target = $region3
    $region8: #{tpu_custom_call.1} parent=1 // loop_exit
      _
    %263 = vsyncpa [#allocation3], 1
    %s264 = scalar_lea.sflag [#allocation3], 1
    %265 = vsyncpa %s264, 1
    %266 = vsyncpa [#allocation4], 1
    %s267 = scalar_lea.sflag [#allocation4], 1
    %268 = vsyncpa %s267, 1
    %269 = vsyncpa [#allocation5], 1
    %s270 = scalar_lea.sflag [#allocation5], 1
    %271 = vsyncpa %s270, 1

</llo_original>
